<compile_context>
chip_gen: v7x
topology: tpu7x:2x2x1
jax: 0.10.0
libtpu: 0.0.40
codegen_flags: <defaults>
</compile_context>

<pallas_src>
import numpy as np
import jax
import jax.numpy as jnp
from jax import lax
from jax.experimental import pallas as pl
from jax.experimental.pallas import tpu as pltpu


def _round_up(x, m):
    return ((x + m - 1) // m) * m


# ----------------------------------------------------------------------------
# Deterministic parameter helpers (analytic mel init) — plain JAX / numpy glue
# ----------------------------------------------------------------------------
def mel_filter_params(n_filters, min_freq, max_freq, sample_rate):
    min_mel = 1127.0 * np.log1p(min_freq / 700.0)
    max_mel = 1127.0 * np.log1p(max_freq / 700.0)
    peaks_mel = np.linspace(min_mel, max_mel, n_filters + 2)
    peaks_hz = 700.0 * np.expm1(peaks_mel / 1127.0)
    center_freqs = peaks_hz[1:-1] * (2.0 * np.pi / sample_rate)   # rad / sample
    bw_hz = peaks_hz[2:] - peaks_hz[:-2]
    sigmas = (sample_rate / 2.0 / bw_hz) * np.sqrt(2.0 * np.log(2.0)) / np.pi
    return center_freqs.astype(np.float32), sigmas.astype(np.float32)


def gabor_filters_ri(size, center_freqs, sigmas):
    """Real / imaginary parts of complex gabor kernels, each (F, size)."""
    t = jnp.arange(-(size // 2), (size + 1) // 2, dtype=jnp.float32)
    denom = 1.0 / (np.sqrt(2.0 * np.pi) * sigmas)                    # (F,)
    gauss = jnp.exp(jnp.outer(-1.0 / (2.0 * sigmas ** 2), t ** 2))   # (F, K)
    phase = jnp.outer(center_freqs, t)
    real = denom[:, None] * jnp.cos(phase) * gauss
    imag = denom[:, None] * jnp.sin(phase) * gauss
    return real, imag


def gauss_windows(size, sigmas):
    """Gaussian lowpass pooling windows, shape (F, size)."""
    t = jnp.arange(0, size, dtype=jnp.float32)
    numerator = t * (2.0 / max(size - 1, 1)) - 1.0
    return jnp.exp(-0.5 * (numerator[None, :] / sigmas[:, None]) ** 2)


# ----------------------------------------------------------------------------
# VMEM budget + tile planning (full per-tile accounting, per-chip budget)
# ----------------------------------------------------------------------------
def _vmem_budget_bytes():
    """~48 MiB on v7x (64 MiB physical), ~96 MiB on v5e/v6e (128 MiB);
    conservative 48 MiB if the query is unavailable."""
    cap = None
    try:
        cap = getattr(pltpu.get_tpu_info(), "vmem_capacity_bytes", None)
    except Exception:
        cap = None
    if not cap:
        cap = 64 * 1024 * 1024
    return int(min(max(int(cap * 0.75), 32 * 1024 * 1024), 96 * 1024 * 1024))


def _plan_tiles(*, T_pool, F_pad, K_pad, ps, W, bpe, budget):
    """Size the per-grid-step tile from the VMEM budget:
      2x patch block + 2x out block + 2x taps/win + live-chunk headroom.
    Grows TP (pooled rows per tile) until ~80% of the budget is used while
    keeping >= ~4 time tiles so the BlockSpec pipeline can overlap DMA."""
    qh = (W - 1) // ps                                   # pooling halo (phase slots)
    # output-chunk rows: bound the live f32 (matmul out + modulus + acc) to a
    # few tens of vregs so nothing spills back to VMEM.
    OC = max(8, min(256, ((12800 // F_pad) // 8) * 8))
    OC = min(OC, _round_up(T_pool, 8))
    CR = _round_up(OC + qh, 8)                           # conv rows read per chunk
    K_lane = _round_up(K_pad, 128)                       # VMEM lane-pads the patch minor dim
    fixed = (2 * (K_pad * 2 * F_pad * bpe)               # taps (default double buffer)
             + 2 * (_round_up(W, 8) * F_pad * 4)         # win
             + (2 << 20))                                # live values / internal scratch
    per_chunk = 2 * ps * OC * K_lane * bpe + 2 * OC * F_pad * 4
    base = 2 * ps * CR * K_lane * bpe
    usable = int(budget * 0.8) - fixed - base
    n_chunks = max(1, usable // max(per_chunk, 1))
    n_chunks = int(min(n_chunks, max(1, -(-T_pool // (OC * 4)))))
    TP = n_chunks * OC
    n_tiles = -(-T_pool // TP)
    E_rows = _round_up((n_chunks - 1) * OC + CR, 16)     # bf16 sublane packing
    return dict(OC=OC, CR=CR, n_chunks=n_chunks, TP=TP, n_tiles=n_tiles,
                E_rows=E_rows, rows_blk=ps * E_rows)


# ----------------------------------------------------------------------------
# Host-side phase-split im2col (dense-minor-dim HBM stream for the kernel)
# ----------------------------------------------------------------------------
def _build_phase_patches(x2, *, pad_c, K, K_pad, s, ps, pad_w, T_conv,
                         n_tiles, TP, E_rows, dtype):
    """Layout (B, n_tiles, ps*E_rows, K_pad): row (p*E_rows + q) of tile i
    holds the K input samples of conv-output row  i*TP*ps + q*ps + p - pad_w,
    zeroed when that row is outside [0, T_conv) (reproduces the pooling's zero
    padding and the last tile's overhang)."""
    B = x2.shape[0]
    xg = jnp.pad(x2, ((0, 0), (pad_c, pad_c)))
    cols = lax.conv_general_dilated_patches(
        xg[:, None, :], filter_shape=(K,), window_strides=(s,), padding=[(0, 0)],
        dimension_numbers=('NCH', 'OIH', 'NCH'), precision=lax.Precision.HIGHEST)
    cols = jnp.transpose(cols, (0, 2, 1))                        # (B, T_conv, K)
    assert cols.shape[1] == T_conv, (cols.shape, T_conv)
    r = (jnp.arange(n_tiles)[:, None, None] * (TP * ps)
         + jnp.arange(ps)[None, :, None]
         + jnp.arange(E_rows)[None, None, :] * ps) - pad_w       # (n_tiles, ps, E_rows)
    valid = (r >= 0) & (r < T_conv)
    rows = jnp.clip(r, 0, T_conv - 1)
    pat = jnp.where(valid[None, :, :, :, None], cols[:, rows, :], 0.0)
    pat = pat.reshape(B, n_tiles, ps * E_rows, K)
    if K_pad > K:
        pat = jnp.pad(pat, ((0, 0), (0, 0), (0, 0), (0, K_pad - K)))
    # TODO(synk): for very small K (v5e, HBM-bound) build the patches in-kernel
    # from the raw signal window instead of paying the K/s-fold im2col traffic.
    return pat.astype(dtype)


# ----------------------------------------------------------------------------
# Pallas kernel: per (time-tile, batch) grid step, chunked over OC pooled rows:
#   MXU matmul (phase-split patches @ [real|imag] taps, f32 acc) -> squared
#   modulus -> gaussian pooling via unit-stride sublane slices -> lane-dense
#   (F_pad = k*128) output store.  No scratch, no strided loads, no big f32
#   intermediate.
# ----------------------------------------------------------------------------
def _make_kernel(*, ps, W, F_pad, OC, CR, n_chunks, E_rows):
    taps_per_phase = [list(range(p, W, ps)) for p in range(ps)]

    def kernel(patch_ref, taps_ref, win_ref, out_ref):
        # patch_ref: (ps*E_rows, K_pad)  phase-major im2col patches (halo baked in)
        # taps_ref : (K_pad, 2*F_pad)    [real | imag] gabor taps
        # win_ref  : (W, F_pad)          per-filter gaussian pooling taps (f32)
        # out_ref  : (TP, F_pad)         pooled output tile (f32), TP = n_chunks*OC
        win = win_ref[...]                               # tiny, stays in vregs

        @pl.loop(0, n_chunks)
        def _chunk(c):
            o_start = pl.multiple_of(c * OC, 8)          # pooled-row chunk start
            acc = jnp.zeros((OC, F_pad), jnp.float32)
            for p in range(ps):                          # static, ps <= pool_stride
                taps_j = taps_per_phase[p]
                if not taps_j:
                    continue
                ri = jnp.dot(patch_ref[pl.ds(p * E_rows + o_start, CR), :],
                             taps_ref[...],
                             preferred_element_type=jnp.float32)   # (CR, 2*F_pad)
                # squared modulus (real/imag live in 128-lane-aligned halves)
                e = ri[:, :F_pad] ** 2 + ri[:, F_pad:] ** 2        # (CR, F_pad) f32
                for j in taps_j:                          # 1-3 taps per phase
                    q = j // ps
                    acc = acc + win[j:j + 1, :] * lax.slice_in_dim(e, q, q + OC, axis=0)
            out_ref[pl.ds(o_start, OC), :] = acc

    return kernel


def _run_supergroup(patches, taps, win, *, B, n_tiles, TP, F_pad, K_pad,
                    rows_blk, ps, W, OC, CR, n_chunks, E_rows, vmem_limit):
    kernel = _make_kernel(ps=ps, W=W, F_pad=F_pad, OC=OC, CR=CR,
                          n_chunks=n_chunks, E_rows=E_rows)
    return pl.pallas_call(
        kernel,
        out_shape=jax.ShapeDtypeStruct((B, n_tiles * TP, F_pad), jnp.float32),
        # Long time axis first so v7x megacore sharding stays balanced at B=1-2.
        grid=(n_tiles, B),
        in_specs=[
            pl.BlockSpec((None, None, rows_blk, K_pad), lambda i, b: (b, i, 0, 0)),
            # taps / win are grid-constant; default double buffering costs only
            # a few hundred KiB which the VMEM plan already accounts for.
            # TODO(synk): single-buffer them (pipeline_mode) once ubiquitous.
            pl.BlockSpec((K_pad, 2 * F_pad), lambda i, b: (0, 0)),
            pl.BlockSpec((W, F_pad), lambda i, b: (0, 0)),
        ],
        out_specs=pl.BlockSpec((None, TP, F_pad), lambda i, b: (b, i, 0)),
        compiler_params=pltpu.CompilerParams(
            dimension_semantics=("parallel", "parallel"),
            vmem_limit_bytes=int(vmem_limit)),
    )(patches, taps, win)


# ----------------------------------------------------------------------------
# Module equivalent
# ----------------------------------------------------------------------------
class GroupedFilterbankPallas:
    def __init__(self, n_filters, num_groups, min_freq, max_freq, sample_rate,
                 pool_size, pool_stride, pool_init=0.4, conv_win_factor=3,
                 stride_factor=1.0, filter_type='gabor', init_filter='mel',
                 matmul_dtype=jnp.bfloat16):
        # TODO(synk): 'gammatone' filter_type / non-mel init not implemented.
        assert filter_type == 'gabor' and init_filter == 'mel'
        self.num_groups = num_groups
        self.n_filters = n_filters
        self.pool_size = pool_size
        self.pool_stride = pool_stride
        self.conv_win_factor = conv_win_factor
        self.stride_factor = stride_factor
        self.psbl_strides = [i for i in range(1, pool_stride + 1) if pool_stride % i == 0]
        self.sample_rate = sample_rate
        # bf16 MXU operands by default (f32 accumulation); pass jnp.float32 for
        # accuracy-sensitive use (squared modulus doubles quantization error).
        self.matmul_dtype = matmul_dtype
        cf, bw = mel_filter_params(n_filters, min_freq, max_freq, sample_rate)
        self.center_freqs = cf      # learnable nn.Parameters in torch; analytic here
        self.bandwidths = bw
        self.pooling_widths = np.full((n_filters,), float(pool_init), np.float32)

    def get_stride(self, cent_freq):
        stride = max(1, np.pi / cent_freq * self.stride_factor)
        stride = self.psbl_strides[np.searchsorted(self.psbl_strides, stride, side='right') - 1]
        return stride, self.pool_stride // stride

    def _group_plans(self):
        """Static per-group geometry; consecutive groups sharing a conv stride
        are fused into one 'super group' (one patch stream / one pallas_call)."""
        splits = np.arange(self.num_groups + 1) * self.n_filters // self.num_groups
        groups = []
        for a, b in zip(splits[:-1], splits[1:]):
            a, b = int(a), int(b)
            s, ps = self.get_stride(float(np.max(self.center_freqs[a:b])))
            K = int(np.max(self.bandwidths[a:b]) * self.conv_win_factor)
            K += 1 - K % 2
            groups.append(dict(a=a, b=b, s=int(s), ps=int(ps), K=int(K)))
        supers = []
        for g in groups:
            if supers and supers[-1]['s'] == g['s']:
                supers[-1]['members'].append(g)
            else:
                supers.append(dict(s=g['s'], ps=g['ps'], members=[g]))
        return supers

    def __call__(self, x, with_reference=False):
        B, C, T = x.shape
        assert C == 1
        x2 = x[:, 0, :].astype(jnp.float32)                          # (B, T)
        bpe = jnp.dtype(self.matmul_dtype).itemsize
        budget = _vmem_budget_bytes()
        T_pool_all = (T - 1) // self.pool_stride + 1

        outs_tm, refs = [], []
        for sg in self._group_plans():
            s, ps, members = sg['s'], sg['ps'], sg['members']
            a0, b1 = members[0]['a'], members[-1]['b']
            Fg = b1 - a0
            K_max = max(m['K'] for m in members)
            pad_c = K_max // 2
            T_conv = (T - 1) // s + 1
            W = int(self.pool_size / s + 0.5)
            W += 1 - W % 2
            pad_w = W // 2
            T_pool = (T_conv - 1) // ps + 1
            assert T_pool == T_pool_all

            # --- lane/sublane-dense, dtype-aware padding -------------------
            F_pad = _round_up(Fg, 128)
            K_pad = _round_up(K_max, 128) if K_max >= 64 else _round_up(K_max, 16)

            plan = _plan_tiles(T_pool=T_pool, F_pad=F_pad, K_pad=K_pad, ps=ps,
                               W=W, bpe=bpe, budget=budget)

            # --- combined [real|imag] taps (centered per member kernel) and
            #     per-filter pooling taps, zero-padded to the lane grid -------
            taps = jnp.zeros((K_pad, 2 * F_pad), jnp.float32)
            win = jnp.zeros((W, F_pad), jnp.float32)
            col = 0
            for m in members:
                fg = m['b'] - m['a']
                cf = jnp.asarray(self.center_freqs[m['a']:m['b']])
                bw = jnp.asarray(self.bandwidths[m['a']:m['b']])
                kre, kim = gabor_filters_ri(m['K'], cf, bw)            # (fg, K_m)
                r0 = (K_max - m['K']) // 2                              # centered
                taps = taps.at[r0:r0 + m['K'], col:col + fg].set(kre.T)
                taps = taps.at[r0:r0 + m['K'], F_pad + col:F_pad + col + fg].set(kim.T)
                sig = jnp.asarray(self.pooling_widths[m['a']:m['b']]) / s * self.pool_size / W
                win = win.at[:, col:col + fg].set(gauss_windows(W, sig).T)
                col += fg
            taps = taps.astype(self.matmul_dtype)

            patches = _build_phase_patches(
                x2, pad_c=pad_c, K=K_max, K_pad=K_pad, s=s, ps=ps, pad_w=pad_w,
                T_conv=T_conv, n_tiles=plan['n_tiles'], TP=plan['TP'],
                E_rows=plan['E_rows'], dtype=self.matmul_dtype)

            out2d = _run_supergroup(
                patches, taps, win, B=B, n_tiles=plan['n_tiles'], TP=plan['TP'],
                F_pad=F_pad, K_pad=K_pad, rows_blk=plan['rows_blk'], ps=ps, W=W,
                OC=plan['OC'], CR=plan['CR'], n_chunks=plan['n_chunks'],
                E_rows=plan['E_rows'], vmem_limit=budget)
            # keep time-major; a single transpose happens after all groups.
            # TODO(synk): mask the last tile's overhang instead of computing
            # zero rows that are sliced off here.
            outs_tm.append(out2d[:, :T_pool, :Fg])

            if with_reference:   # pure-JAX reference mirroring F.conv1d semantics
                for m in members:
                    fg = m['b'] - m['a']
                    cf = jnp.asarray(self.center_freqs[m['a']:m['b']])
                    bw = jnp.asarray(self.bandwidths[m['a']:m['b']])
                    kre, kim = gabor_filters_ri(m['K'], cf, bw)
                    kcat = jnp.concatenate([kre, kim], axis=0)
                    r1 = lax.conv_general_dilated(
                        x2[:, None, :], kcat[:, None, :], (s,),
                        [(m['K'] // 2, m['K'] // 2)],
                        dimension_numbers=('NCH', 'OIH', 'NCH'))
                    e = r1[:, :fg] ** 2 + r1[:, fg:] ** 2
                    sig = jnp.asarray(self.pooling_widths[m['a']:m['b']]) / s * self.pool_size / W
                    wins = gauss_windows(W, sig)
                    r2 = lax.conv_general_dilated(
                        e, wins[:, None, :], (ps,), [(pad_w, pad_w)],
                        dimension_numbers=('NCH', 'OIH', 'NCH'),
                        feature_group_count=fg)
                    refs.append(r2)

        out_tm = jnp.concatenate(outs_tm, axis=-1)          # (B, T_pool, n_filters)
        out = jnp.transpose(out_tm, (0, 2, 1))               # single transpose pass
        if with_reference:
            return out, jnp.concatenate(refs, axis=1)
        return out


if __name__ == "__main__":
    key = jax.random.PRNGKey(0)
    B, T = 2, 256
    x = jax.random.normal(key, (B, 1, T), dtype=jnp.float32)    # NCW, single channel

    fb = GroupedFilterbankPallas(n_filters=8, num_groups=2, min_freq=60.0,
                                 max_freq=7800.0, sample_rate=16000,
                                 pool_size=8, pool_stride=4)

    out, ref = fb(x, with_reference=True)
    out = jax.block_until_ready(out)
    ref = jax.block_until_ready(ref)

    assert out.shape == ref.shape, (out.shape, ref.shape)
    # bf16 MXU operands (f32 accumulation) -> loose tolerance; pass
    # matmul_dtype=jnp.float32 to the module for tight agreement.
    if not np.allclose(np.asarray(out), np.asarray(ref), rtol=5e-2, atol=5e-2):
        err = float(np.max(np.abs(np.asarray(out) - np.asarray(ref))))
        raise AssertionError(f"Pallas output does not match reference (max abs err {err})")
    print("KERNEL_OK")
</pallas_src>

<mosaic_0001>
module attributes {stable_mosaic.version = 11 : i64} {
  func.func @kernel(%arg0: i32, %arg1: i32, %arg2: memref<1x1x80x32xbf16, #tpu.memory_space<vmem>>, %arg3: memref<32x256xbf16, #tpu.memory_space<vmem>>, %arg4: memref<3x128xf32, #tpu.memory_space<vmem>>, %arg5: memref<1x64x128xf32, #tpu.memory_space<vmem>>) attributes {dimension_semantics = [#tpu.dimension_semantics<parallel>, #tpu.dimension_semantics<parallel>], iteration_bounds = array<i64: 1, 2>, scalar_prefetch = 0 : i64, scratch_operands = 0 : i64, tpu.core_type = #tpu.core_type<tc>, window_params = [{transform_indices = @transform_0, window_bounds = array<i64: 1, 1, 80, 32>}, {pipeline_mode = #tpu.pipeline_mode<synchronous>, transform_indices = @transform_1, window_bounds = array<i64: 32, 256>}, {pipeline_mode = #tpu.pipeline_mode<synchronous>, transform_indices = @transform_2, window_bounds = array<i64: 3, 128>}, {transform_indices = @transform_3, window_bounds = array<i64: 1, 64, 128>}]} {
    %c0 = arith.constant 0 : index
    %c0_0 = arith.constant 0 : index
    %0 = vector.load %arg4[%c0, %c0_0] : memref<3x128xf32, #tpu.memory_space<vmem>>, vector<3x128xf32>
    %c0_i32 = arith.constant 0 : i32
    %c1_i32 = arith.constant 1 : i32
    %1 = arith.muli %c0_i32, %c1_i32 : i32
    %c0_i32_1 = arith.constant 0 : i32
    %2 = arith.addi %c0_i32_1, %1 : i32
    %c64_i32 = arith.constant 64 : i32
    %3 = arith.muli %2, %c64_i32 : i32
    %4 = tpu.assume_multiple %3, 8 : i32
    %cst = arith.constant 0.000000e+00 : f32
    %5 = vector.broadcast %cst : f32 to vector<64x128xf32>
    %c0_i32_2 = arith.constant 0 : i32
    %6 = arith.addi %c0_i32_2, %4 : i32
    %c0_3 = arith.constant 0 : index
    %c0_4 = arith.constant 0 : index
    %7 = arith.index_cast %6 : i32 to index
    %c0_5 = arith.constant 0 : index
    %8 = vector.load %arg2[%c0_3, %c0_4, %7, %c0_5] : memref<1x1x80x32xbf16, #tpu.memory_space<vmem>>, vector<1x1x72x32xbf16>
    %9 = vector.shape_cast %8 : vector<1x1x72x32xbf16> to vector<72x32xbf16>
    %c0_6 = arith.constant 0 : index
    %c0_7 = arith.constant 0 : index
    %10 = vector.load %arg3[%c0_6, %c0_7] : memref<32x256xbf16, #tpu.memory_space<vmem>>, vector<32x256xbf16>
    %cst_8 = arith.constant dense<0.000000e+00> : vector<72x256xf32>
    %11 = tpu.matmul %9, %10, %cst_8 {dimension_numbers = #tpu.dot_dimension_numbers<[1], [0], [0], [1], [0, 0, 1, 1], [], []>} : vector<72x32xbf16>, vector<32x256xbf16>, vector<72x256xf32> -> vector<72x256xf32>
    %12 = vector.extract_strided_slice %11 {offsets = [0, 0], sizes = [72, 128], strides = [1, 1]} : vector<72x256xf32> to vector<72x128xf32>
    %13 = arith.mulf %12, %12 : vector<72x128xf32>
    %14 = vector.extract_strided_slice %11 {offsets = [0, 128], sizes = [72, 128], strides = [1, 1]} : vector<72x256xf32> to vector<72x128xf32>
    %15 = arith.mulf %14, %14 : vector<72x128xf32>
    %16 = arith.addf %13, %15 : vector<72x128xf32>
    %17 = vector.extract_strided_slice %0 {offsets = [0, 0], sizes = [1, 128], strides = [1, 1]} : vector<3x128xf32> to vector<1x128xf32>
    %18 = vector.extract_strided_slice %16 {offsets = [0, 0], sizes = [64, 128], strides = [1, 1]} : vector<72x128xf32> to vector<64x128xf32>
    %19 = vector.broadcast %17 : vector<1x128xf32> to vector<64x128xf32>
    %20 = arith.mulf %19, %18 : vector<64x128xf32>
    %21 = arith.addf %5, %20 : vector<64x128xf32>
    %22 = vector.extract_strided_slice %0 {offsets = [1, 0], sizes = [1, 128], strides = [1, 1]} : vector<3x128xf32> to vector<1x128xf32>
    %23 = vector.extract_strided_slice %16 {offsets = [1, 0], sizes = [64, 128], strides = [1, 1]} : vector<72x128xf32> to vector<64x128xf32>
    %24 = vector.broadcast %22 : vector<1x128xf32> to vector<64x128xf32>
    %25 = arith.mulf %24, %23 : vector<64x128xf32>
    %26 = arith.addf %21, %25 : vector<64x128xf32>
    %27 = vector.extract_strided_slice %0 {offsets = [2, 0], sizes = [1, 128], strides = [1, 1]} : vector<3x128xf32> to vector<1x128xf32>
    %28 = vector.extract_strided_slice %16 {offsets = [2, 0], sizes = [64, 128], strides = [1, 1]} : vector<72x128xf32> to vector<64x128xf32>
    %29 = vector.broadcast %27 : vector<1x128xf32> to vector<64x128xf32>
    %30 = arith.mulf %29, %28 : vector<64x128xf32>
    %31 = arith.addf %26, %30 : vector<64x128xf32>
    %c0_9 = arith.constant 0 : index
    %32 = arith.index_cast %4 : i32 to index
    %c0_10 = arith.constant 0 : index
    %33 = vector.load %arg5[%c0_9, %32, %c0_10] : memref<1x64x128xf32, #tpu.memory_space<vmem>>, vector<1x64x128xf32>
    %34 = vector.shape_cast %33 : vector<1x64x128xf32> to vector<64x128xf32>
    %35 = vector.shape_cast %31 : vector<64x128xf32> to vector<1x64x128xf32>
    tpu.vector_store %arg5[%c0_9, %32, %c0_10], %35 {strides = array<i32>} : memref<1x64x128xf32, #tpu.memory_space<vmem>>, vector<1x64x128xf32>,
    %c1_i32_11 = arith.constant 1 : i32
    return
  }
  func.func @transform_0(%arg0: i32, %arg1: i32) -> (i32, i32, i32, i32) {
    %c0_i32 = arith.constant 0 : i32
    %c0_i32_0 = arith.constant 0 : i32
    %c0_i32_1 = arith.constant 0 : i32
    return %arg1, %arg0, %c0_i32, %c0_i32_0 : i32, i32, i32, i32
  }
  func.func @transform_1(%arg0: i32, %arg1: i32) -> (i32, i32) {
    %c0_i32 = arith.constant 0 : i32
    %c0_i32_0 = arith.constant 0 : i32
    %c0_i32_1 = arith.constant 0 : i32
    return %c0_i32, %c0_i32_0 : i32, i32
  }
  func.func @transform_2(%arg0: i32, %arg1: i32) -> (i32, i32) {
    %c0_i32 = arith.constant 0 : i32
    %c0_i32_0 = arith.constant 0 : i32
    %c0_i32_1 = arith.constant 0 : i32
    return %c0_i32, %c0_i32_0 : i32, i32
  }
  func.func @transform_3(%arg0: i32, %arg1: i32) -> (i32, i32, i32) {
    %c0_i32 = arith.constant 0 : i32
    %c0_i32_0 = arith.constant 0 : i32
    return %arg1, %arg0, %c0_i32 : i32, i32, i32
  }
}

</mosaic_0001>

<llo_original>
// kernel: tpu_custom_call.1
$region0: #{tpu_custom_call.1}
  #allocation0 [shape = 'u32[]', space=smem, size = 0x4, offset = 0x4, fixed_abs, tag = 'smem constant byte address 0x4 - core index']
  #allocation1 [shape = 'u32[144,128]{1,0:T(1,128)}', space=vmem, size = 0x12000, scoped, tag = 'internal scratch']
  %s0 = inlined_call_operand.vmem [shape: bf16[2,1,80,32], index: 0, kind: input, shape index: {}]
  %s1 = inlined_call_operand.vmem [shape: bf16[32,256], index: 1, kind: input, shape index: {}]
  %s2 = inlined_call_operand.vmem [shape: f32[3,128], index: 2, kind: input, shape index: {}]
  %s3 = inlined_call_operand.hbm [shape: f32[2,64,128], index: 3, kind: output, shape index: {}]
  %s4 = sld [smem:[#allocation0]]
  $region45: #{tpu_custom_call.1} parent=0
    _
  %s6 = ssub.s32 1, %s4
  %s7 = scalar_select 0, %s6, %s4
  $region1: #{tpu_custom_call.1} parent=0
    #allocation2 [shape = 'u8[65536]{0}', space=vmem, size = 0x10000, scoped, tag = 'output window, operand 0']
    #allocation3 [shape = 's32[2]{0}', space=sflag, size = 0x8, scoped, tag = 'scoped memory for tpu_custom_call.1']
    %8 = vsyncpa [#allocation3], 0
    %s9 = scalar_lea.sflag [#allocation3], 1
    %10 = vsyncpa %s9, 0
    loop: start=0, step=1, limit=4
    $region2: #{tpu_custom_call.1} parent=1 // loop_pre_header
      _
    $region3: #{tpu_custom_call.1} parent=1 // loop_header
      %s12 = sphi 0, %s16
      %p13 = scmp.ge.s32.totalorder %s12, 4
      %s19 = sphi 0, %s31
      %s20 = sphi 0, %s27
      %s21 = sphi 0, %s19
      %s22 = sphi 0, %s20
      %s23 = sphi 0, %s21
      %s24 = sphi 0, %s22
      %s36 = sphi 0, %s38
      %s39 = sphi 0, %s36
      %s40 = sphi 0, %s39
      %s56 = sphi 0, %s40
      %s60 = sphi 0, %s60
      %s62 = sphi 0, %s60
      %s63 = sphi 0, %s62
      %s77 = sphi 0, %s63
      %s81 = sphi 0, %s81
      %s83 = sphi 0, %s81
      %s84 = sphi 0, %s83
      %s98 = sphi 0, %s84
      %s106 = sphi 0, %s108
      %s109 = sphi 0, %s106
      %s110 = sphi 0, %s109
      %s126 = sphi 0, %s110
    $region4: #{tpu_custom_call.1} parent=1 // loop_header_branch
      %15 = sbr.rel (%p13) target = $region8
    $region5: #{tpu_custom_call.1} parent=1 // loop_body
      %s17 = ssub.s32 %s12, 1
      %s18 = ssub.s32 %s12, 2
      %s25 = sadd.s32 1, %s20
      %p26 = scmp.ge.s32.totalorder %s25, 2
      %s27 = scalar_select %p26, 0, %s25
      %s28 = sadd.s32 1, %s19
      %s29 = scalar_select %p26, %s28, %s19
      %p30 = scmp.ge.s32.totalorder %s29, 1
      %s31 = scalar_select %p30, 0, %s29
      %s32 = ssub.s32 %s20, %s27
      %s33 = ssub.s32 %s19, %s31
      %s34 = sor.u32 %s32, %s33
      %p35 = scmp.eq.s32.totalorder %s34, 0
      %s37 = sadd.s32 %s36, 1
      %s38 = scalar_select %p35, %s36, %s37
      %p41 = pneg %p35
      %p42 = scmp.eq.s32.totalorder %s12, 1
      %p43 = por %p41, %p42
      %p44 = scmp.ne.s32.totalorder %s36, %s39
      %p45 = scmp.eq.s32.totalorder %s12, 0
      %p46 = por %p44, %p45
      %p47 = scmp.ne.s32.totalorder %s36, %s39
      %p48 = scmp.eq.s32.totalorder %s17, 1
      %p49 = por %p47, %p48
      %p50 = scmp.ne.s32.totalorder %s39, %s40
      %p51 = scmp.eq.s32.totalorder %s17, 0
      %p52 = por %p50, %p51
      %p53 = scmp.ne.s32.totalorder %s39, %s40
      %p54 = scmp.eq.s32.totalorder %s18, 1
      %p55 = por %p53, %p54
      %p57 = scmp.ne.s32.totalorder %s40, %s56
      %p58 = scmp.eq.s32.totalorder %s18, 0
      %p59 = por %p57, %p58
      %s61 = sadd.s32 %s60, 1
      %p64 = scmp.eq.s32.totalorder %s12, 1
      %p65 = scmp.ne.s32.totalorder %s60, %s62
      %p66 = scmp.eq.s32.totalorder %s12, 0
      %p67 = por %p65, %p66
      %p68 = scmp.ne.s32.totalorder %s60, %s62
      %p69 = scmp.eq.s32.totalorder %s17, 1
      %p70 = por %p68, %p69
      %p71 = scmp.ne.s32.totalorder %s62, %s63
      %p72 = scmp.eq.s32.totalorder %s17, 0
      %p73 = por %p71, %p72
      %p74 = scmp.ne.s32.totalorder %s62, %s63
      %p75 = scmp.eq.s32.totalorder %s18, 1
      %p76 = por %p74, %p75
      %p78 = scmp.ne.s32.totalorder %s63, %s77
      %p79 = scmp.eq.s32.totalorder %s18, 0
      %p80 = por %p78, %p79
      %s82 = sadd.s32 %s81, 1
      %p85 = scmp.eq.s32.totalorder %s12, 1
      %p86 = scmp.ne.s32.totalorder %s81, %s83
      %p87 = scmp.eq.s32.totalorder %s12, 0
      %p88 = por %p86, %p87
      %p89 = scmp.ne.s32.totalorder %s81, %s83
      %p90 = scmp.eq.s32.totalorder %s17, 1
      %p91 = por %p89, %p90
      %p92 = scmp.ne.s32.totalorder %s83, %s84
      %p93 = scmp.eq.s32.totalorder %s17, 0
      %p94 = por %p92, %p93
      %p95 = scmp.ne.s32.totalorder %s83, %s84
      %p96 = scmp.eq.s32.totalorder %s18, 1
      %p97 = por %p95, %p96
      %p99 = scmp.ne.s32.totalorder %s84, %s98
      %p100 = scmp.eq.s32.totalorder %s18, 0
      %p101 = por %p99, %p100
      %s102 = ssub.s32 %s20, %s27
      %s103 = ssub.s32 %s19, %s31
      %s104 = sor.u32 %s102, %s103
      %p105 = scmp.eq.s32.totalorder %s104, 0
      %s107 = sadd.s32 %s106, 1
      %s108 = scalar_select %p105, %s106, %s107
      %p111 = pneg %p105
      %p112 = scmp.eq.s32.totalorder %s12, 1
      %p113 = por %p111, %p112
      %p114 = scmp.ne.s32.totalorder %s106, %s109
      %p115 = scmp.eq.s32.totalorder %s12, 0
      %p116 = por %p114, %p115
      %p117 = scmp.ne.s32.totalorder %s106, %s109
      %p118 = scmp.eq.s32.totalorder %s17, 1
      %p119 = por %p117, %p118
      %p120 = scmp.ne.s32.totalorder %s109, %s110
      %p121 = scmp.eq.s32.totalorder %s17, 0
      %p122 = por %p120, %p121
      %p123 = scmp.ne.s32.totalorder %s109, %s110
      %p124 = scmp.eq.s32.totalorder %s18, 1
      %p125 = por %p123, %p124
      %p127 = scmp.ne.s32.totalorder %s110, %s126
      %p128 = scmp.eq.s32.totalorder %s18, 0
      %p129 = por %p127, %p128
      %p130 = scmp.le.s32.totalorder 1, %s12
      %p131 = scmp.lt.s32.totalorder %s12, 3
      %p132 = pnand %p130, %p131
      %p133 = pneg %p132
      // Predicated region
      $region9: #{tpu_custom_call.1} parent=5 // pred_check
        _
      $region10: #{tpu_custom_call.1} parent=5 // pred_check_branch
        %135 = sbr.rel (%p132) target = $region12
      $region11: #{tpu_custom_call.1} parent=5 // pred_region
        %s136 = ssub.s32 %s12, 1
        // Predicated region
        $region13: #{tpu_custom_call.1} parent=11 // pred_check
          %p137 = pneg %p73
        $region14: #{tpu_custom_call.1} parent=11 // pred_check_branch
          %139 = sbr.rel (%p137) target = $region16
        $region15: #{tpu_custom_call.1} parent=11 // pred_region
          _
        $region16: #{tpu_custom_call.1} parent=11 // pred_fallthru
          _
        // Predicated region
        $region17: #{tpu_custom_call.1} parent=11 // pred_check
          %p140 = pneg %p94
        $region18: #{tpu_custom_call.1} parent=11 // pred_check_branch
          %142 = sbr.rel (%p140) target = $region20
        $region19: #{tpu_custom_call.1} parent=11 // pred_region
          _
        $region20: #{tpu_custom_call.1} parent=11 // pred_fallthru
          _
      $region12: #{tpu_custom_call.1} parent=5 // pred_fallthru
        _
      %p143 = scmp.lt.s32.totalorder %s12, 2
      // Predicated region
      $region21: #{tpu_custom_call.1} parent=5 // pred_check
        %p144 = pneg %p143
      $region22: #{tpu_custom_call.1} parent=5 // pred_check_branch
        %146 = sbr.rel (%p144) target = $region24
      $region23: #{tpu_custom_call.1} parent=5 // pred_region
        // Predicated region
        $region25: #{tpu_custom_call.1} parent=23 // pred_check
          %p147 = pneg %p46
        $region26: #{tpu_custom_call.1} parent=23 // pred_check_branch
          %149 = sbr.rel (%p147) target = $region28
        $region27: #{tpu_custom_call.1} parent=23 // pred_region
          %p150 = scmp.lt.s32.totalorder %s20, 1
          %s151 = scalar_select %p150, %s20, 1
          %p152 = scmp.lt.s32.totalorder %s19, 0
          %s153 = scalar_select %p152, %s19, 0
          %s154 = smul.addr %s153, 10
          %s155 = smul.addr %s151, 10
          %s156 = sadd.s32 %s154, %s155
          %s157 = smul.addr %s156, 4
          %s158 = scalar_lea.vmem %s0, %s157
        $region28: #{tpu_custom_call.1} parent=23 // pred_fallthru
          _
      $region24: #{tpu_custom_call.1} parent=5 // pred_fallthru
        _
      %p159 = scmp.le.s32.totalorder 1, %s12
      %p160 = scmp.lt.s32.totalorder %s12, 3
      %p161 = pnand %p159, %p160
      %p162 = pneg %p161
      // Predicated region
      $region29: #{tpu_custom_call.1} parent=5 // pred_check
        _
      $region30: #{tpu_custom_call.1} parent=5 // pred_check_branch
        %164 = sbr.rel (%p161) target = $region32
      $region31: #{tpu_custom_call.1} parent=5 // pred_region
        %s165 = ssub.s32 %s12, 1
        %p166 = scmp.lt.s32.totalorder %s22, 1
        %s167 = scalar_select %p166, %s22, 1
        %p168 = scmp.lt.s32.totalorder %s21, 0
        %s169 = scalar_select %p168, %s21, 0
        %s170 = smul.addr %s169, 10
        %s171 = smul.addr %s167, 10
        %s172 = sadd.s32 %s170, %s171
        %s173 = smul.addr %s172, 4
        %s174 = scalar_lea.vmem %s0, %s173
        %p175 = pneg %p52
        %p176 = pneg %p49
        %p177 = pneg %p73
        %p178 = pneg %p70
        %p179 = pneg %p94
        %p180 = pneg %p91
        %p181 = pneg %p122
        %p182 = pneg %p119
        %s183 = sand.u32 %s109, 1
        %s184 = scalar_lea.sflag [#allocation3], %s183
        %s185 = sand.u32 %s109, 1
        %s186 = smul.addr %s185, 64
        %s187 = scalar_lea.vmem [#allocation2], %s186
        %p188 = scmp.lt.s32.totalorder %s22, 1
        %s189 = scalar_select %p188, %s22, 1
        %p190 = scmp.lt.s32.totalorder %s21, 0
        %s191 = scalar_select %p190, %s21, 0
        %s192 = smul.addr %s191, 10
        %s193 = smul.addr %s189, 10
        %s194 = sadd.s32 %s192, %s193
        %s195 = smul.addr %s194, 4
        %s196 = scalar_lea.vmem %s0, %s195
        %s197 = smul.u32 8, %s21
        %v199 = vld [vmem:[%s2] sm:$0x7]
        %v200 = vld [vmem:[%s196] sm:$0xf]
        %v201 = vld [vmem:[%s196 + $0x4] sm:$0xf]
        %v202 = vld [vmem:[%s196 + $0x8] sm:$0xf]
        %v203 = vld [vmem:[%s196 + $0xc] sm:$0xf]
        %v204 = vld [vmem:[%s196 + $0x10] sm:$0xf]
        %v205 = vld [vmem:[%s196 + $0x14] sm:$0xf]
        %v206 = vld [vmem:[%s196 + $0x18] sm:$0xf]
        %v207 = vld [vmem:[%s196 + $0x1c] sm:$0xf]
        %v208 = vld [vmem:[%s196 + $0x20] sm:$0xf]
        %v209 = vld [vmem:[%s1] sm:$0xff]
        %v210 = vld [vmem:[%s1 + $0x8] sm:$0xff]
        %v211 = vld [vmem:[%s1 + $0x10] sm:$0xff]
        %v212 = vld [vmem:[%s1 + $0x18] sm:$0xff]
        %v222 = vunpack.c.l.b16 %v200
        %v223 = vunpack.c.l.b16 %v201
        %v224 = vunpack.c.l.b16 %v202
        %v225 = vunpack.c.l.b16 %v203
        %v226 = vunpack.c.l.b16 %v204
        %v227 = vunpack.c.l.b16 %v205
        %v228 = vunpack.c.l.b16 %v206
        %v229 = vunpack.c.l.b16 %v207
        %v230 = vunpack.c.l.b16 %v208
        %v231 = vpack.c.b16 %v223, %v222
        %v232 = vpack.c.b16 %v225, %v224
        %v233 = vpack.c.b16 %v227, %v226
        %v234 = vpack.c.b16 %v229, %v228
        %v235 = vpack.c.b16 %v230, %v230
        %v240 = vunpack.c.l.b16 %v209
        %v241 = vunpack.c.h.b16 %v209
        %v242 = vunpack.c.l.b16 %v210
        %v243 = vunpack.c.h.b16 %v210
        %v244 = vunpack.c.l.b16 %v211
        %v245 = vunpack.c.h.b16 %v211
        %v246 = vunpack.c.l.b16 %v212
        %v247 = vunpack.c.h.b16 %v212
        %v248 = vpack.c.b16 %v242, %v240
        %v249 = vpack.c.b16 %v243, %v241
        %v250 = vpack.c.b16 %v246, %v244
        %v251 = vpack.c.b16 %v247, %v245
        %vm256 = vcmask 261120
        %v258 = vsel %vm256, %v231, 0
        %v261 = vsel %vm256, %v232, 0
        %v264 = vsel %vm256, %v233, 0
        %v267 = vsel %vm256, %v234, 0
        %v270 = vsel %vm256, %v235, 0
        %272 = vmatprep.subr.bf16.mxu0 %v249
        %273 = vmatpush1.bf16.msra.mxu0 %v248
        %274 = vmatprep.subr.bf16.mxu0 %v251
        %275 = vmatpush1.bf16.msra.mxu0 %v250
        %276 = vmatprep.subr.bf16.mxu0 0
        %277 = vmatpush1.bf16.msra.mxu0 0
        %278 = vmatprep.subr.bf16.mxu0 0
        %279 = vmatpush1.bf16.msra.mxu0 0
        %280 = vmatprep.subr.bf16.mxu0 0
        %281 = vmatpush1.bf16.msra.mxu0 0
        %282 = vmatprep.subr.bf16.mxu0 0
        %283 = vmatpush1.bf16.msra.mxu0 0
        %284 = vmatprep.subr.bf16.mxu0 0
        %285 = vmatpush1.bf16.msra.mxu0 0
        %286 = vmatprep.subr.bf16.mxu0 0
        %287 = vmatpush1.bf16.msra.mxu0 0
        %288 = vmatprep.subr.bf16.mxu0 0
        %289 = vmatpush1.bf16.msra.mxu0 0
        %290 = vmatprep.subr.bf16.mxu0 0
        %291 = vmatpush1.bf16.msra.mxu0 0
        %292 = vmatprep.subr.bf16.mxu0 0
        %293 = vmatpush1.bf16.msra.mxu0 0
        %294 = vmatprep.subr.bf16.mxu0 0
        %295 = vmatpush1.bf16.msra.mxu0 0
        %296 = vmatprep.subr.bf16.mxu0 0
        %297 = vmatpush1.bf16.msra.mxu0 0
        %298 = vmatprep.subr.bf16.mxu0 0
        %299 = vmatpush1.bf16.msra.mxu0 0
        %300 = vmatprep.subr.bf16.mxu0 0
        %301 = vmatpush1.bf16.msra.mxu0 0
        %302 = vmatprep.subr.bf16.mxu0 0
        %303 = vmatpush1.bf16.msra.mxu0 0
        %304 = vmatprep.mubr.bf16.mxu0 0
        %305 = vmatmul.mubr.bf16.gmra.mrb[0].mxu0 %v258
        %v306 = vpop.f32.mrb[0].mxu0
        %v307 = vadd.f32 0.0, %v306
        %v308 = vpop.f32.mrb[0].mxu0
        %v309 = vadd.f32 0.0, %v308
        %v310 = vpop.f32.mrb[0].mxu0
        %v311 = vadd.f32 0.0, %v310
        %v312 = vpop.f32.mrb[0].mxu0
        %v313 = vadd.f32 0.0, %v312
        %314 = vmatprep.mubr.bf16.mxu0 0
        %315 = vmatmul.mubr.bf16.gmra.mrb[0].mxu0 %v261
        %v316 = vpop.f32.mrb[0].mxu0
        %v317 = vadd.f32 0.0, %v316
        %v318 = vpop.f32.mrb[0].mxu0
        %v319 = vadd.f32 0.0, %v318
        %v320 = vpop.f32.mrb[0].mxu0
        %v321 = vadd.f32 0.0, %v320
        %v322 = vpop.f32.mrb[0].mxu0
        %v323 = vadd.f32 0.0, %v322
        %324 = vmatprep.mubr.bf16.mxu0 0
        %325 = vmatmul.mubr.bf16.gmra.mrb[0].mxu0 %v264
        %v326 = vpop.f32.mrb[0].mxu0
        %v327 = vadd.f32 0.0, %v326
        %v328 = vpop.f32.mrb[0].mxu0
        %v329 = vadd.f32 0.0, %v328
        %v330 = vpop.f32.mrb[0].mxu0
        %v331 = vadd.f32 0.0, %v330
        %v332 = vpop.f32.mrb[0].mxu0
        %v333 = vadd.f32 0.0, %v332
        %334 = vmatprep.mubr.bf16.mxu0 0
        %335 = vmatmul.mubr.bf16.gmra.mrb[0].mxu0 %v267
        %v336 = vpop.f32.mrb[0].mxu0
        %v337 = vadd.f32 0.0, %v336
        %v338 = vpop.f32.mrb[0].mxu0
        %v339 = vadd.f32 0.0, %v338
        %v340 = vpop.f32.mrb[0].mxu0
        %v341 = vadd.f32 0.0, %v340
        %v342 = vpop.f32.mrb[0].mxu0
        %v343 = vadd.f32 0.0, %v342
        %344 = vmatprep.mubr.bf16.mxu0 0
        %345 = vmatmul.mubr.bf16.gmra.mrb[0].mxu0 %v270
        %v346 = vpop.f32.mrb[0].mxu0
        %v347 = vadd.f32 0.0, %v346
        %v348 = vpop.f32.mrb[0].mxu0
        %v349 = vadd.f32 0.0, %v348
        %v350 = vpop.f32.mrb[0].mxu0
        %v351 = vpop.f32.mrb[0].mxu0
        %352 = vdwg.mxu0
        %v353 = vmul.f32 %v307, %v307
        %v354 = vmul.f32 %v311, %v311
        %v355 = vmul.f32 %v317, %v317
        %v356 = vmul.f32 %v321, %v321
        %v357 = vmul.f32 %v327, %v327
        %v358 = vmul.f32 %v331, %v331
        %v359 = vmul.f32 %v337, %v337
        %v360 = vmul.f32 %v341, %v341
        %v361 = vmul.f32 %v347, %v347
        %v362 = vmul.f32 %v309, %v309
        %v363 = vmul.f32 %v313, %v313
        %v364 = vmul.f32 %v319, %v319
        %v365 = vmul.f32 %v323, %v323
        %v366 = vmul.f32 %v329, %v329
        %v367 = vmul.f32 %v333, %v333
        %v368 = vmul.f32 %v339, %v339
        %v369 = vmul.f32 %v343, %v343
        %v370 = vmul.f32 %v349, %v349
        %v371 = vadd.f32 %v353, %v362
        %v372 = vadd.f32 %v354, %v363
        %v373 = vadd.f32 %v355, %v364
        %v374 = vadd.f32 %v356, %v365
        %v375 = vadd.f32 %v357, %v366
        %v376 = vadd.f32 %v358, %v367
        %v377 = vadd.f32 %v359, %v368
        %v378 = vadd.f32 %v360, %v369
        %v379 = vadd.f32 %v361, %v370
        %v380 = vlaneseq
        %v381 = vshrl.u32 %v380, 7
        %v382 = vsub.s32 0, %v381
        %v383 = vrot.slane %v199, %v382
        %v384 = vmul.f32 %v383, %v371
        %v385 = vmul.f32 %v383, %v372
        %v386 = vmul.f32 %v383, %v373
        %v387 = vmul.f32 %v383, %v374
        %v388 = vmul.f32 %v383, %v375
        %v389 = vmul.f32 %v383, %v376
        %v390 = vmul.f32 %v383, %v377
        %v391 = vmul.f32 %v383, %v378
        %v392 = vadd.f32 %v384, 0.0
        %v393 = vadd.f32 %v385, 0.0
        %v394 = vadd.f32 %v386, 0.0
        %v395 = vadd.f32 %v387, 0.0
        %v396 = vadd.f32 %v388, 0.0
        %v397 = vadd.f32 %v389, 0.0
        %v398 = vadd.f32 %v390, 0.0
        %v399 = vadd.f32 %v391, 0.0
        %v400 = vlaneseq
        %v401 = vshrl.u32 %v400, 7
        %v402 = vsub.s32 1, %v401
        %v403 = vrot.slane %v199, %v402
        %v404 = vmul.f32 %v403, %v371
        %v405 = vmul.f32 %v403, %v372
        %v406 = vmul.f32 %v403, %v373
        %v407 = vmul.f32 %v403, %v374
        %v408 = vmul.f32 %v403, %v375
        %v409 = vmul.f32 %v403, %v376
        %v410 = vmul.f32 %v403, %v377
        %v411 = vmul.f32 %v403, %v378
        %v412 = vmul.f32 %v403, %v379
        %vm422 = vcmask 1046528
        %v423 = vrot.slane %v404, 1
        %v424 = vrot.slane %v405, 1
        %v425 = vsel %vm422, %v423, %v424
        %v426 = vrot.slane %v406, 1
        %v427 = vsel %vm422, %v424, %v426
        %v428 = vrot.slane %v407, 1
        %v429 = vsel %vm422, %v426, %v428
        %v430 = vrot.slane %v408, 1
        %v431 = vsel %vm422, %v428, %v430
        %v432 = vrot.slane %v409, 1
        %v433 = vsel %vm422, %v430, %v432
        %v434 = vrot.slane %v410, 1
        %v435 = vsel %vm422, %v432, %v434
        %v436 = vrot.slane %v411, 1
        %v437 = vsel %vm422, %v434, %v436
        %v438 = vrot.slane %v412, 1
        %v439 = vsel %vm422, %v436, %v438
        %v448 = vadd.f32 %v392, %v425
        %v449 = vadd.f32 %v393, %v427
        %v450 = vadd.f32 %v394, %v429
        %v451 = vadd.f32 %v395, %v431
        %v452 = vadd.f32 %v396, %v433
        %v453 = vadd.f32 %v397, %v435
        %v454 = vadd.f32 %v398, %v437
        %v455 = vadd.f32 %v399, %v439
        %v456 = vlaneseq
        %v457 = vshrl.u32 %v456, 7
        %v458 = vsub.s32 2, %v457
        %v459 = vrot.slane %v199, %v458
        %v460 = vmul.f32 %v459, %v371
        %v461 = vmul.f32 %v459, %v372
        %v462 = vmul.f32 %v459, %v373
        %v463 = vmul.f32 %v459, %v374
        %v464 = vmul.f32 %v459, %v375
        %v465 = vmul.f32 %v459, %v376
        %v466 = vmul.f32 %v459, %v377
        %v467 = vmul.f32 %v459, %v378
        %v468 = vmul.f32 %v459, %v379
        %vm478 = vcmask 1045504
        %v479 = vrot.slane %v460, 2
        %v480 = vrot.slane %v461, 2
        %v481 = vsel %vm478, %v479, %v480
        %v482 = vrot.slane %v462, 2
        %v483 = vsel %vm478, %v480, %v482
        %v484 = vrot.slane %v463, 2
        %v485 = vsel %vm478, %v482, %v484
        %v486 = vrot.slane %v464, 2
        %v487 = vsel %vm478, %v484, %v486
        %v488 = vrot.slane %v465, 2
        %v489 = vsel %vm478, %v486, %v488
        %v490 = vrot.slane %v466, 2
        %v491 = vsel %vm478, %v488, %v490
        %v492 = vrot.slane %v467, 2
        %v493 = vsel %vm478, %v490, %v492
        %v494 = vrot.slane %v468, 2
        %v495 = vsel %vm478, %v492, %v494
        %v504 = vadd.f32 %v448, %v481
        %v505 = vadd.f32 %v449, %v483
        %v506 = vadd.f32 %v450, %v485
        %v507 = vadd.f32 %v451, %v487
        %v508 = vadd.f32 %v452, %v489
        %v509 = vadd.f32 %v453, %v491
        %v510 = vadd.f32 %v454, %v493
        %v511 = vadd.f32 %v455, %v495
        %512 = vst [vmem:[%s187] sm:$0xff] %v504
        %513 = vst [vmem:[%s187 + $0x8] sm:$0xff] %v505
        %514 = vst [vmem:[%s187 + $0x10] sm:$0xff] %v506
        %515 = vst [vmem:[%s187 + $0x18] sm:$0xff] %v507
        %516 = vst [vmem:[%s187 + $0x20] sm:$0xff] %v508
        %517 = vst [vmem:[%s187 + $0x28] sm:$0xff] %v509
        %518 = vst [vmem:[%s187 + $0x30] sm:$0xff] %v510
        %519 = vst [vmem:[%s187 + $0x38] sm:$0xff] %v511
        %s520 = sand.u32 %s109, 1
        %s521 = scalar_lea.sflag [#allocation3], %s520
        %s522 = sand.u32 %s109, 1
        %s523 = smul.addr %s522, 64
        %s524 = scalar_lea.vmem [#allocation2], %s523
        // Predicated region
        $region33: #{tpu_custom_call.1} parent=31 // pred_check
          %p525 = pneg %p119
        $region34: #{tpu_custom_call.1} parent=31 // pred_check_branch
          %527 = sbr.rel (%p525) target = $region36
        $region35: #{tpu_custom_call.1} parent=31 // pred_region
          %s528 = smul.u32 8, %s21
          %s530 = ssub.s32 1024, 1024
          %531 = vsyncadd %s521, %s530
          %s532 = smul.addr %s22, 8
          %s533 = sadd.s32 %s528, %s532
          %s534 = smul.addr %s533, 128
          %s535 = scalar_lea.hbm %s3, %s534
          %s536 = sshll.u32 %s524, 4
          %s537 = int_to_ptr.vmem [resolvable:$true] %s536
          %542 = dma.vmem_to_hbm [thread:$0]  %s537, 1024, %s535, %s521, 128, 128, 8
        $region36: #{tpu_custom_call.1} parent=31 // pred_fallthru
          _
      $region32: #{tpu_custom_call.1} parent=5 // pred_fallthru
        _
      %p543 = scmp.le.s32.totalorder 2, %s12
      // Predicated region
      $region37: #{tpu_custom_call.1} parent=5 // pred_check
        %p544 = pneg %p543
      $region38: #{tpu_custom_call.1} parent=5 // pred_check_branch
        %546 = sbr.rel (%p544) target = $region40
      $region39: #{tpu_custom_call.1} parent=5 // pred_region
        %s547 = ssub.s32 %s12, 2
        // Predicated region
        $region41: #{tpu_custom_call.1} parent=39 // pred_check
          %p548 = pneg %p125
        $region42: #{tpu_custom_call.1} parent=39 // pred_check_branch
          %550 = sbr.rel (%p548) target = $region44
        $region43: #{tpu_custom_call.1} parent=39 // pred_region
          %s551 = sand.u32 %s110, 1
          %s552 = scalar_lea.sflag [#allocation3], %s551
          %s553 = sand.u32 %s110, 1
          %s554 = smul.addr %s553, 64
          %s555 = scalar_lea.vmem [#allocation2], %s554
          %556 = dma.done %s552, 1024
        $region44: #{tpu_custom_call.1} parent=39 // pred_fallthru
          _
      $region40: #{tpu_custom_call.1} parent=5 // pred_fallthru
        _
    $region6: #{tpu_custom_call.1} parent=1 // loop_footer
      %s16 = sadd.s32 1, %s12
    $region7: #{tpu_custom_call.1} parent=1 // loop_footer_branch
      %11 = sbr.rel target = $region3
    $region8: #{tpu_custom_call.1} parent=1 // loop_exit
      _
    %557 = vsyncpa [#allocation3], 1
    %s558 = scalar_lea.sflag [#allocation3], 1
    %559 = vsyncpa %s558, 1

</llo_original>
